<compile_context>
chip_gen: v7x
topology: tpu7x:2x2x1
jax: 0.10.0
libtpu: 0.0.40
codegen_flags: <defaults>
</compile_context>

<pallas_src>
import numpy as np
import jax
import jax.numpy as jnp
from jax.experimental import pallas as pl
from jax.experimental.pallas import tpu as pltpu

_LANE = 128
_INT32_MAX = int(np.iinfo(np.int32).max)
_VMEM_LIMIT_CACHE = None


def _round_up(x, m):
    return ((x + m - 1) // m) * m


def _vmem_limit():
    """Per-generation scoped-VMEM limit: ~3/4 of physical capacity (≈96 MiB on
    v5e/v6e, ≈48 MiB on v7x); falls back to the always-safe 32 MiB."""
    global _VMEM_LIMIT_CACHE
    if _VMEM_LIMIT_CACHE is None:
        try:
            cap = int(pltpu.get_tpu_info().vmem_capacity_bytes)
            _VMEM_LIMIT_CACHE = min(cap * 3 // 4, 96 * 1024 * 1024)
        except Exception:  # pragma: no cover - conservative fallback
            _VMEM_LIMIT_CACHE = 32 * 1024 * 1024
    return _VMEM_LIMIT_CACHE


def _pick_row_tile(m_real):
    # Big tiles amortise the ~0.35us per-grid-step overhead; keep >= 2 tiles
    # once there is real work so the "parallel" grid can feed both v7x cores.
    if m_real >= 2048:
        return 1024
    if m_real >= 256:
        return _round_up(m_real, 16) // 2     # two row tiles, multiple of 8
    return _round_up(m_real, 8)               # single small tile


# --------------------------- Kernel 1: 3-NN inverse-distance interpolation --

def _interp_kernel(xyz1_ref, xyz2_ref, pts2_ref, out_ref):
    # xyz1_ref: (1, TN, 3) f32 channels-last; xyz2_ref: (1, 3, S) f32
    # channels-first (no wrapper transpose); pts2_ref: (1, S, D2p) bf16;
    # out_ref: (1, TN, D2p) bf16.
    x1 = xyz1_ref[0]                                 # (TN, 3)
    x2 = xyz2_ref[0]                                 # (3, S)
    tn = x1.shape[0]
    s = x2.shape[1]

    # Squared distances via 3 unrolled VPU passes of (a-b)^2; exact and >= 0.
    d = jnp.zeros((tn, s), jnp.float32)
    for c in range(3):
        diff = x1[:, c:c + 1] - x2[c:c + 1, :]
        d = d + diff * diff

    # Packed min+argmin: for d >= 0 the int32 bit pattern is order-preserving.
    # Zero the low idx_bits mantissa bits and OR in the column index so a
    # single cross-lane min per neighbour yields distance AND index.  The
    # truncation perturbs the selected distance by <= 2^-(23-idx_bits) relative
    # (negligible next to the 1e-8 epsilon); tie-break is lowest column, as in
    # a stable sort.
    idx_bits = max(1, int(np.ceil(np.log2(s))))
    lo_mask = (1 << idx_bits) - 1
    col = jax.lax.broadcasted_iota(jnp.int32, (tn, s), 1)
    kmat = jnp.bitwise_or(
        jnp.bitwise_and(pltpu.bitcast(d, jnp.int32), jnp.int32(~lo_mask)), col)

    wmat = jnp.zeros((tn, s), jnp.float32)           # sparse 3-NN weight matrix
    norm = jnp.zeros((tn, 1), jnp.float32)
    # min(3, s) matches torch's dists[:, :, :3] when 1 < S < 3 (i.e. S == 2).
    for _ in range(min(3, s)):
        kmin = jnp.min(kmat, axis=-1, keepdims=True)            # (TN, 1) int32
        idx = jnp.bitwise_and(kmin, jnp.int32(lo_mask))          # argmin column
        dmin = pltpu.bitcast(kmin - idx, jnp.float32)            # truncated dist
        w = pl.reciprocal(dmin + 1e-8, approx=True)              # EUP slot
        onehot = (col == idx).astype(jnp.float32)
        wmat = wmat + w * onehot
        norm = norm + w
        kmat = jnp.where(col == idx, jnp.int32(_INT32_MAX), kmat)

    # interpolated = (W @ points2) / norm.  The matmul runs bf16 on the MXU;
    # normalisation is a (TN,1) EUP reciprocal + (TN,D2p) multiply, which is
    # cheaper than dividing the (TN,S) weight matrix whenever S > D2p and lets
    # W go to the MXU unnormalised in bf16.
    acc = jnp.dot(wmat.astype(jnp.bfloat16), pts2_ref[0],
                  preferred_element_type=jnp.float32)
    out_ref[0] = (acc * pl.reciprocal(norm, approx=True)).astype(out_ref.dtype)


def three_nn_interpolate(xyz1_nlast, xyz2_cfirst, pts2_nlast):
    """xyz1 [B,N,3], xyz2 [B,3,S] (channels-first as given), points2 [B,S,D2]
    -> [B,N,D2] bf16."""
    B, N, _ = xyz1_nlast.shape
    S = xyz2_cfirst.shape[-1]
    D2 = pts2_nlast.shape[-1]
    TN = min(512, _round_up(N, 8))
    Np = _round_up(N, TN)
    D2p = _round_up(D2, _LANE)                        # lane-dense output stores
    xyz1_p = jnp.pad(xyz1_nlast, ((0, 0), (0, Np - N), (0, 0)))
    pts2_p = jnp.pad(pts2_nlast, ((0, 0), (0, 0), (0, D2p - D2))
                     ).astype(jnp.bfloat16)           # bf16: half DMA + VMEM
    # TODO(synk): single-buffer the grid-resident xyz2/pts2 blocks via
    # pipeline_mode=pl.Buffered(1) for extra v7x VMEM headroom once
    # buffer_count=1 is confirmed supported by the installed Pallas build.
    out = pl.pallas_call(
        _interp_kernel,
        out_shape=jax.ShapeDtypeStruct((B, Np, D2p), jnp.bfloat16),
        grid=(B, Np // TN),
        in_specs=[
            pl.BlockSpec((1, TN, 3), lambda b, n: (b, n, 0)),
            pl.BlockSpec((1, 3, S), lambda b, n: (b, 0, 0)),     # resident over n
            pl.BlockSpec((1, S, D2p), lambda b, n: (b, 0, 0)),   # resident over n
        ],
        out_specs=pl.BlockSpec((1, TN, D2p), lambda b, n: (b, n, 0)),
        compiler_params=pltpu.CompilerParams(
            dimension_semantics=("parallel", "parallel"),
            vmem_limit_bytes=_vmem_limit()),
    )(xyz1_p, xyz2_cfirst, pts2_p)
    return out[:, :N, :D2]


# --------- MLP: fused (BN+ReLU of previous layer) + 1x1-conv matmul + stats --

def _make_mm_stats_kernel(fuse_prev_bn_relu, tm, m_real, has_row_pad):
    """Pass A of one MLP layer over a (TM, Cin_p) row tile:
    optional fused BN+ReLU of the previous layer's pre-BN output, then a bf16
    MXU matmul with f32 accumulation (conv bias dropped: it cancels exactly
    under training-mode BN mean subtraction), plus per-tile channel sum /
    sum-of-squares written with two direct slice stores."""
    if fuse_prev_bn_relu:
        def kernel(x_ref, scale_ref, shift_ref, w_ref, y_ref, st_ref):
            x = x_ref[...].astype(jnp.float32)
            z = jnp.maximum(x * scale_ref[...] + shift_ref[...], 0.0)
            if has_row_pad:
                # relu(shift) on padded rows would leak into this layer's
                # batch statistics; zero them with a cheap iota mask.
                row = (pl.program_id(0) * tm
                       + jax.lax.broadcasted_iota(jnp.int32, (tm, 1), 0))
                z = jnp.where(row < m_real, z, 0.0)
            y = jnp.dot(z.astype(jnp.bfloat16), w_ref[...],
                        preferred_element_type=jnp.float32)
            y_ref[...] = y.astype(y_ref.dtype)
            st_ref[0, 0:1, :] = jnp.sum(y, axis=0, keepdims=True)
            st_ref[0, 1:2, :] = jnp.sum(y * y, axis=0, keepdims=True)
    else:
        def kernel(x_ref, w_ref, y_ref, st_ref):
            y = jnp.dot(x_ref[...], w_ref[...],
                        preferred_element_type=jnp.float32)
            y_ref[...] = y.astype(y_ref.dtype)
            st_ref[0, 0:1, :] = jnp.sum(y, axis=0, keepdims=True)
            st_ref[0, 1:2, :] = jnp.sum(y * y, axis=0, keepdims=True)
    return kernel


def _bn_relu_kernel(y_ref, scale_ref, shift_ref, z_ref):
    # Standalone BN+ReLU — only used for the LAST layer (earlier layers are
    # fused into the next layer's matmul pass).
    y = y_ref[...].astype(jnp.float32)
    z_ref[...] = jnp.maximum(y * scale_ref[...] + shift_ref[...], 0.0
                             ).astype(z_ref.dtype)


def _bn_scale_shift(part_stats, gamma_p, beta_p, m_real):
    # Tiny global reduction of per-tile stats -> BN(train) scale/shift
    # (biased batch stats over the m_real real rows; padded rows are zero).
    tot = jnp.sum(part_stats, axis=0)                 # (2, Cout_p)
    mean = tot[0] / m_real
    var = jnp.maximum(tot[1] / m_real - mean * mean, 0.0)
    inv = jax.lax.rsqrt(var + 1e-5)
    scale = (gamma_p * inv).reshape(1, -1)
    shift = (beta_p - mean * gamma_p * inv).reshape(1, -1)
    return scale, shift


# --------------------------------------------------------- Module wrapper --

class PointNetFeaturePropagation:
    def __init__(self, in_channel, mlp, key):
        self.params = []     # unpadded (w, b, gamma, beta) for the reference
        self.layers = []     # (W^T padded bf16, gamma padded, beta padded, Cout)
        last = in_channel
        for out in mlp:
            key, kw, kb = jax.random.split(key, 3)
            bound = 1.0 / np.sqrt(last)               # PyTorch Conv1d default init
            w = jax.random.uniform(kw, (out, last), jnp.float32, -bound, bound)
            b = jax.random.uniform(kb, (out,), jnp.float32, -bound, bound)
            gamma = jnp.ones((out,), jnp.float32)     # BN defaults
            beta = jnp.zeros((out,), jnp.float32)
            self.params.append((w, b, gamma, beta))

            cin_p = _round_up(last, _LANE)
            cout_p = _round_up(out, _LANE)
            # Pre-transpose to (Cin,Cout), pad to lane multiples, store bf16.
            w_t = jnp.zeros((cin_p, cout_p), jnp.float32).at[:last, :out].set(w.T)
            g_p = jnp.zeros((cout_p,), jnp.float32).at[:out].set(gamma)
            b_p = jnp.zeros((cout_p,), jnp.float32).at[:out].set(beta)
            self.layers.append((w_t.astype(jnp.bfloat16), g_p, b_p, out))
            last = out
        self.in_channel = in_channel

    def __call__(self, xyz1, xyz2, points1, points2):
        # xyz1 [B,C,N], xyz2 [B,C,S], points1 [B,D1,N] or None, points2 [B,D2,S]
        B, _, N = xyz1.shape
        S = xyz2.shape[-1]
        pts2_t = jnp.transpose(points2, (0, 2, 1))             # (B, S, D2)
        if S == 1:
            interp = jnp.broadcast_to(
                pts2_t, (B, N, pts2_t.shape[-1])).astype(jnp.bfloat16)
        else:
            interp = three_nn_interpolate(
                jnp.transpose(xyz1, (0, 2, 1)), xyz2, pts2_t)  # (B, N, D2) bf16
        # TODO(synk): remove the remaining XLA-side transpose/concat plumbing by
        # feeding points1 as a second layer-0 matmul operand and emitting the
        # final activation channels-first from the last BN+ReLU pass.
        if points1 is not None:
            x = jnp.concatenate(
                [jnp.transpose(points1, (0, 2, 1)).astype(jnp.bfloat16), interp],
                axis=-1)
        else:
            x = interp                                          # (B, N, Cin)
        cin = x.shape[-1]
        assert cin == self.in_channel, (cin, self.in_channel)

        # Flatten to rows; pad channels to layer-0 padded width and rows to a
        # multiple of the row tile (zero rows contribute zero to BN stats).
        m_real = B * N
        cin_p = self.layers[0][0].shape[0]
        tm = _pick_row_tile(m_real)
        mp = _round_up(m_real, tm)
        n_tiles = mp // tm
        has_row_pad = mp != m_real
        x = x.reshape(m_real, cin)
        x = jnp.pad(x, ((0, mp - m_real), (0, cin_p - cin)))    # bf16

        cparams = pltpu.CompilerParams(dimension_semantics=("parallel",),
                                       vmem_limit_bytes=_vmem_limit())
        scale = shift = None
        y = x
        for li, (w_t, g_p, b_p, _cout) in enumerate(self.layers):
            cin_l, cout_l = w_t.shape
            fuse = li > 0
            kernel = _make_mm_stats_kernel(fuse, tm, m_real, has_row_pad)
            in_specs = [pl.BlockSpec((tm, cin_l), lambda i: (i, 0))]
            args = [y]
            if fuse:
                in_specs += [pl.BlockSpec((1, cin_l), lambda i: (0, 0)),
                             pl.BlockSpec((1, cin_l), lambda i: (0, 0))]
                args += [scale, shift]
            in_specs.append(pl.BlockSpec((cin_l, cout_l), lambda i: (0, 0)))
            args.append(w_t)
            y, part = pl.pallas_call(
                kernel,
                out_shape=(jax.ShapeDtypeStruct((mp, cout_l), jnp.bfloat16),
                           jax.ShapeDtypeStruct((n_tiles, 2, cout_l),
                                                jnp.float32)),
                grid=(n_tiles,),
                in_specs=in_specs,
                out_specs=(pl.BlockSpec((tm, cout_l), lambda i: (i, 0)),
                           pl.BlockSpec((1, 2, cout_l), lambda i: (i, 0, 0))),
                compiler_params=cparams,
            )(*args)
            scale, shift = _bn_scale_shift(part, g_p, b_p, m_real)

        cout_last_p = self.layers[-1][0].shape[1]
        z = pl.pallas_call(
            _bn_relu_kernel,
            out_shape=jax.ShapeDtypeStruct((mp, cout_last_p), jnp.float32),
            grid=(n_tiles,),
            in_specs=[pl.BlockSpec((tm, cout_last_p), lambda i: (i, 0)),
                      pl.BlockSpec((1, cout_last_p), lambda i: (0, 0)),
                      pl.BlockSpec((1, cout_last_p), lambda i: (0, 0))],
            out_specs=pl.BlockSpec((tm, cout_last_p), lambda i: (i, 0)),
            compiler_params=cparams,
        )(y, scale, shift)

        out = z[:m_real, :self.layers[-1][3]].reshape(B, N, -1)
        return jnp.transpose(out, (0, 2, 1))                    # [B, D', N]


# ------------------------------------------------------ pure-JAX reference --

def reference_forward(params, xyz1, xyz2, points1, points2):
    xyz1_t = jnp.transpose(xyz1, (0, 2, 1))
    xyz2_t = jnp.transpose(xyz2, (0, 2, 1))
    pts2_t = jnp.transpose(points2, (0, 2, 1))
    B, N, _ = xyz1_t.shape
    S = xyz2_t.shape[1]
    if S == 1:
        interp = jnp.broadcast_to(pts2_t, (B, N, pts2_t.shape[-1]))
    else:
        diff = xyz1_t[:, :, None, :] - xyz2_t[:, None, :, :]        # (B,N,S,3)
        dists = jnp.sum(diff * diff, axis=-1)
        idx = jnp.argsort(dists, axis=-1)[:, :, :3]
        d3 = jnp.take_along_axis(dists, idx, axis=-1)
        recip = 1.0 / (d3 + 1e-8)
        weight = recip / jnp.sum(recip, -1, keepdims=True)
        gathered = jax.vmap(lambda p, i: p[i])(pts2_t, idx)         # (B,N,3,D2)
        interp = jnp.sum(gathered * weight[..., None], axis=2)
    if points1 is not None:
        x = jnp.concatenate([jnp.transpose(points1, (0, 2, 1)), interp], -1)
    else:
        x = interp
    for (w, b, gamma, beta) in params:
        # Mirror the kernel's matmul precision (bf16 operands, f32 accumulate);
        # bias kept here to demonstrate it cancels under BN(train).
        y = jnp.einsum('bnc,co->bno', x.astype(jnp.bfloat16),
                       w.T.astype(jnp.bfloat16),
                       preferred_element_type=jnp.float32) + b
        mean = jnp.mean(y, axis=(0, 1), keepdims=True)
        var = jnp.mean((y - mean) ** 2, axis=(0, 1), keepdims=True)
        x = jnp.maximum(gamma * (y - mean) * jax.lax.rsqrt(var + 1e-5) + beta, 0.0)
    return jnp.transpose(x, (0, 2, 1))


if __name__ == "__main__":
    key = jax.random.PRNGKey(0)
    B, N, S = 2, 16, 8
    C = 3                      # xyz coordinate channels
    D1, D2 = 6, 10             # points1 / points2 feature channels
    in_channel = D1 + D2
    mlp = [32, 16]

    k1, k2, k3, k4, kp = jax.random.split(key, 5)
    xyz1 = jax.random.normal(k1, (B, C, N), jnp.float32)
    xyz2 = jax.random.normal(k2, (B, C, S), jnp.float32)
    points1 = jax.random.normal(k3, (B, D1, N), jnp.float32)
    points2 = jax.random.normal(k4, (B, D2, S), jnp.float32)

    model = PointNetFeaturePropagation(in_channel, mlp, kp)
    out = jax.block_until_ready(model(xyz1, xyz2, points1, points2))
    assert out.shape == (B, mlp[-1], N), out.shape

    ref = reference_forward(model.params, xyz1, xyz2, points1, points2)
    # Tolerance covers the bf16 storage of the interpolated features / weights
    # / inter-layer activations, the approximate EUP reciprocals in the 3-NN
    # weights and normalisation, the packed-key mantissa truncation, and tiled
    # vs. full-batch f32 accumulation ordering (outputs are BN-normalised,
    # so this is ~4% of one standard deviation).
    np.testing.assert_allclose(np.asarray(out), np.asarray(ref),
                               rtol=4e-2, atol=4e-2)
    print("KERNEL_OK")
</pallas_src>

<mosaic_0001>
module attributes {stable_mosaic.version = 11 : i64} {
  func.func @_interp_kernel(%arg0: i32, %arg1: i32, %arg2: memref<1x16x3xf32, #tpu.memory_space<vmem>>, %arg3: memref<1x3x8xf32, #tpu.memory_space<vmem>>, %arg4: memref<1x8x128xbf16, #tpu.memory_space<vmem>>, %arg5: memref<1x16x128xbf16, #tpu.memory_space<vmem>>) attributes {dimension_semantics = [#tpu.dimension_semantics<parallel>, #tpu.dimension_semantics<parallel>], iteration_bounds = array<i64: 2, 1>, scalar_prefetch = 0 : i64, scratch_operands = 0 : i64, tpu.core_type = #tpu.core_type<tc>, window_params = [{transform_indices = @transform_0, window_bounds = array<i64: 1, 16, 3>}, {transform_indices = @transform_1, window_bounds = array<i64: 1, 3, 8>}, {transform_indices = @transform_2, window_bounds = array<i64: 1, 8, 128>}, {transform_indices = @transform_3, window_bounds = array<i64: 1, 16, 128>}]} {
    %c0 = arith.constant 0 : index
    %c0_0 = arith.constant 0 : index
    %c0_1 = arith.constant 0 : index
    %0 = vector.load %arg2[%c0, %c0_0, %c0_1] : memref<1x16x3xf32, #tpu.memory_space<vmem>>, vector<1x16x3xf32>
    %1 = vector.shape_cast %0 : vector<1x16x3xf32> to vector<16x3xf32>
    %c0_2 = arith.constant 0 : index
    %c0_3 = arith.constant 0 : index
    %c0_4 = arith.constant 0 : index
    %2 = vector.load %arg3[%c0_2, %c0_3, %c0_4] : memref<1x3x8xf32, #tpu.memory_space<vmem>>, vector<1x3x8xf32>
    %3 = vector.shape_cast %2 : vector<1x3x8xf32> to vector<3x8xf32>
    %cst = arith.constant 0.000000e+00 : f32
    %4 = vector.broadcast %cst : f32 to vector<16x8xf32>
    %5 = vector.extract_strided_slice %1 {offsets = [0, 0], sizes = [16, 1], strides = [1, 1]} : vector<16x3xf32> to vector<16x1xf32>
    %6 = vector.extract_strided_slice %3 {offsets = [0, 0], sizes = [1, 8], strides = [1, 1]} : vector<3x8xf32> to vector<1x8xf32>
    %7 = vector.broadcast %5 : vector<16x1xf32> to vector<16x8xf32>
    %8 = vector.broadcast %6 : vector<1x8xf32> to vector<16x8xf32>
    %9 = arith.subf %7, %8 : vector<16x8xf32>
    %10 = arith.mulf %9, %9 : vector<16x8xf32>
    %11 = arith.addf %4, %10 : vector<16x8xf32>
    %12 = vector.extract_strided_slice %1 {offsets = [0, 1], sizes = [16, 1], strides = [1, 1]} : vector<16x3xf32> to vector<16x1xf32>
    %13 = vector.extract_strided_slice %3 {offsets = [1, 0], sizes = [1, 8], strides = [1, 1]} : vector<3x8xf32> to vector<1x8xf32>
    %14 = vector.broadcast %12 : vector<16x1xf32> to vector<16x8xf32>
    %15 = vector.broadcast %13 : vector<1x8xf32> to vector<16x8xf32>
    %16 = arith.subf %14, %15 : vector<16x8xf32>
    %17 = arith.mulf %16, %16 : vector<16x8xf32>
    %18 = arith.addf %11, %17 : vector<16x8xf32>
    %19 = vector.extract_strided_slice %1 {offsets = [0, 2], sizes = [16, 1], strides = [1, 1]} : vector<16x3xf32> to vector<16x1xf32>
    %20 = vector.extract_strided_slice %3 {offsets = [2, 0], sizes = [1, 8], strides = [1, 1]} : vector<3x8xf32> to vector<1x8xf32>
    %21 = vector.broadcast %19 : vector<16x1xf32> to vector<16x8xf32>
    %22 = vector.broadcast %20 : vector<1x8xf32> to vector<16x8xf32>
    %23 = arith.subf %21, %22 : vector<16x8xf32>
    %24 = arith.mulf %23, %23 : vector<16x8xf32>
    %25 = arith.addf %18, %24 : vector<16x8xf32>
    %26 = tpu.iota {dimensions = array<i32: 1>} : vector<16x8xi32>
    %27 = tpu.bitcast %25 : vector<16x8xf32> -> vector<16x8xi32>
    %c-8_i32 = arith.constant -8 : i32
    %28 = vector.broadcast %c-8_i32 : i32 to vector<16x8xi32>
    %29 = arith.andi %27, %28 : vector<16x8xi32>
    %30 = arith.ori %29, %26 : vector<16x8xi32>
    %cst_5 = arith.constant 0.000000e+00 : f32
    %31 = vector.broadcast %cst_5 : f32 to vector<16x8xf32>
    %cst_6 = arith.constant 0.000000e+00 : f32
    %32 = vector.broadcast %cst_6 : f32 to vector<16x1xf32>
    %cst_7 = arith.constant dense<2147483647> : vector<16xi32>
    %33 = vector.multi_reduction <minsi>, %30, %cst_7 [1] : vector<16x8xi32> to vector<16xi32>
    %34 = vector.shape_cast %33 : vector<16xi32> to vector<16x1xi32>
    %c7_i32 = arith.constant 7 : i32
    %35 = vector.broadcast %c7_i32 : i32 to vector<16x1xi32>
    %36 = arith.andi %34, %35 : vector<16x1xi32>
    %37 = arith.subi %34, %36 : vector<16x1xi32>
    %38 = tpu.bitcast %37 : vector<16x1xi32> -> vector<16x1xf32>
    %cst_8 = arith.constant 9.99999993E-9 : f32
    %39 = vector.broadcast %cst_8 : f32 to vector<16x1xf32>
    %40 = arith.addf %38, %39 : vector<16x1xf32>
    %41 = tpu.reciprocal %40 {approx = true} : vector<16x1xf32> -> vector<16x1xf32>
    %42 = vector.broadcast %36 : vector<16x1xi32> to vector<16x8xi32>
    %43 = arith.cmpi eq, %26, %42 : vector<16x8xi32>
    %44 = arith.extui %43 : vector<16x8xi1> to vector<16x8xi32>
    %45 = arith.sitofp %44 : vector<16x8xi32> to vector<16x8xf32>
    %46 = vector.broadcast %41 : vector<16x1xf32> to vector<16x8xf32>
    %47 = arith.mulf %46, %45 : vector<16x8xf32>
    %48 = arith.addf %31, %47 : vector<16x8xf32>
    %49 = arith.addf %32, %41 : vector<16x1xf32>
    %50 = vector.broadcast %36 : vector<16x1xi32> to vector<16x8xi32>
    %51 = arith.cmpi eq, %26, %50 : vector<16x8xi32>
    %c2147483647_i32 = arith.constant 2147483647 : i32
    %52 = vector.broadcast %c2147483647_i32 : i32 to vector<16x8xi32>
    %53 = arith.select %51, %52, %30 : vector<16x8xi1>, vector<16x8xi32>
    %cst_9 = arith.constant dense<2147483647> : vector<16xi32>
    %54 = vector.multi_reduction <minsi>, %53, %cst_9 [1] : vector<16x8xi32> to vector<16xi32>
    %55 = vector.shape_cast %54 : vector<16xi32> to vector<16x1xi32>
    %c7_i32_10 = arith.constant 7 : i32
    %56 = vector.broadcast %c7_i32_10 : i32 to vector<16x1xi32>
    %57 = arith.andi %55, %56 : vector<16x1xi32>
    %58 = arith.subi %55, %57 : vector<16x1xi32>
    %59 = tpu.bitcast %58 : vector<16x1xi32> -> vector<16x1xf32>
    %cst_11 = arith.constant 9.99999993E-9 : f32
    %60 = vector.broadcast %cst_11 : f32 to vector<16x1xf32>
    %61 = arith.addf %59, %60 : vector<16x1xf32>
    %62 = tpu.reciprocal %61 {approx = true} : vector<16x1xf32> -> vector<16x1xf32>
    %63 = vector.broadcast %57 : vector<16x1xi32> to vector<16x8xi32>
    %64 = arith.cmpi eq, %26, %63 : vector<16x8xi32>
    %65 = arith.extui %64 : vector<16x8xi1> to vector<16x8xi32>
    %66 = arith.sitofp %65 : vector<16x8xi32> to vector<16x8xf32>
    %67 = vector.broadcast %62 : vector<16x1xf32> to vector<16x8xf32>
    %68 = arith.mulf %67, %66 : vector<16x8xf32>
    %69 = arith.addf %48, %68 : vector<16x8xf32>
    %70 = arith.addf %49, %62 : vector<16x1xf32>
    %71 = vector.broadcast %57 : vector<16x1xi32> to vector<16x8xi32>
    %72 = arith.cmpi eq, %26, %71 : vector<16x8xi32>
    %c2147483647_i32_12 = arith.constant 2147483647 : i32
    %73 = vector.broadcast %c2147483647_i32_12 : i32 to vector<16x8xi32>
    %74 = arith.select %72, %73, %53 : vector<16x8xi1>, vector<16x8xi32>
    %cst_13 = arith.constant dense<2147483647> : vector<16xi32>
    %75 = vector.multi_reduction <minsi>, %74, %cst_13 [1] : vector<16x8xi32> to vector<16xi32>
    %76 = vector.shape_cast %75 : vector<16xi32> to vector<16x1xi32>
    %c7_i32_14 = arith.constant 7 : i32
    %77 = vector.broadcast %c7_i32_14 : i32 to vector<16x1xi32>
    %78 = arith.andi %76, %77 : vector<16x1xi32>
    %79 = arith.subi %76, %78 : vector<16x1xi32>
    %80 = tpu.bitcast %79 : vector<16x1xi32> -> vector<16x1xf32>
    %cst_15 = arith.constant 9.99999993E-9 : f32
    %81 = vector.broadcast %cst_15 : f32 to vector<16x1xf32>
    %82 = arith.addf %80, %81 : vector<16x1xf32>
    %83 = tpu.reciprocal %82 {approx = true} : vector<16x1xf32> -> vector<16x1xf32>
    %84 = vector.broadcast %78 : vector<16x1xi32> to vector<16x8xi32>
    %85 = arith.cmpi eq, %26, %84 : vector<16x8xi32>
    %86 = arith.extui %85 : vector<16x8xi1> to vector<16x8xi32>
    %87 = arith.sitofp %86 : vector<16x8xi32> to vector<16x8xf32>
    %88 = vector.broadcast %83 : vector<16x1xf32> to vector<16x8xf32>
    %89 = arith.mulf %88, %87 : vector<16x8xf32>
    %90 = arith.addf %69, %89 : vector<16x8xf32>
    %91 = arith.addf %70, %83 : vector<16x1xf32>
    %92 = arith.truncf %90 : vector<16x8xf32> to vector<16x8xbf16>
    %c0_16 = arith.constant 0 : index
    %c0_17 = arith.constant 0 : index
    %c0_18 = arith.constant 0 : index
    %93 = vector.load %arg4[%c0_16, %c0_17, %c0_18] : memref<1x8x128xbf16, #tpu.memory_space<vmem>>, vector<1x8x128xbf16>
    %94 = vector.shape_cast %93 : vector<1x8x128xbf16> to vector<8x128xbf16>
    %cst_19 = arith.constant dense<0.000000e+00> : vector<16x128xf32>
    %95 = tpu.matmul %92, %94, %cst_19 {dimension_numbers = #tpu.dot_dimension_numbers<[1], [0], [0], [1], [0, 0, 1, 1], [], []>} : vector<16x8xbf16>, vector<8x128xbf16>, vector<16x128xf32> -> vector<16x128xf32>
    %96 = tpu.reciprocal %91 {approx = true} : vector<16x1xf32> -> vector<16x1xf32>
    %97 = vector.broadcast %96 : vector<16x1xf32> to vector<16x128xf32>
    %98 = arith.mulf %95, %97 : vector<16x128xf32>
    %99 = arith.truncf %98 : vector<16x128xf32> to vector<16x128xbf16>
    %c0_20 = arith.constant 0 : index
    %c0_21 = arith.constant 0 : index
    %c0_22 = arith.constant 0 : index
    %100 = vector.load %arg5[%c0_20, %c0_21, %c0_22] : memref<1x16x128xbf16, #tpu.memory_space<vmem>>, vector<1x16x128xbf16>
    %101 = vector.shape_cast %100 : vector<1x16x128xbf16> to vector<16x128xbf16>
    %102 = vector.shape_cast %99 : vector<16x128xbf16> to vector<1x16x128xbf16>
    tpu.vector_store %arg5[%c0_20, %c0_21, %c0_22], %102 {strides = array<i32>} : memref<1x16x128xbf16, #tpu.memory_space<vmem>>, vector<1x16x128xbf16>,
    return
  }
  func.func @transform_0(%arg0: i32, %arg1: i32) -> (i32, i32, i32) {
    %c0_i32 = arith.constant 0 : i32
    %c0_i32_0 = arith.constant 0 : i32
    return %arg0, %arg1, %c0_i32 : i32, i32, i32
  }
  func.func @transform_1(%arg0: i32, %arg1: i32) -> (i32, i32, i32) {
    %c0_i32 = arith.constant 0 : i32
    %c0_i32_0 = arith.constant 0 : i32
    %c0_i32_1 = arith.constant 0 : i32
    return %arg0, %c0_i32, %c0_i32_0 : i32, i32, i32
  }
  func.func @transform_2(%arg0: i32, %arg1: i32) -> (i32, i32, i32) {
    %c0_i32 = arith.constant 0 : i32
    %c0_i32_0 = arith.constant 0 : i32
    %c0_i32_1 = arith.constant 0 : i32
    return %arg0, %c0_i32, %c0_i32_0 : i32, i32, i32
  }
  func.func @transform_3(%arg0: i32, %arg1: i32) -> (i32, i32, i32) {
    %c0_i32 = arith.constant 0 : i32
    %c0_i32_0 = arith.constant 0 : i32
    return %arg0, %arg1, %c0_i32 : i32, i32, i32
  }
}

</mosaic_0001>

<llo_original>
// kernel: tpu_custom_call.1
$region0: #{tpu_custom_call.1}
  #allocation0 [shape = 'u32[]', space=smem, size = 0x4, offset = 0x4, fixed_abs, tag = 'smem constant byte address 0x4 - core index']
  #allocation1 [shape = 'u32[144,128]{1,0:T(1,128)}', space=vmem, size = 0x12000, scoped, tag = 'internal scratch']
  %s0 = inlined_call_operand.vmem [shape: f32[2,16,3], index: 0, kind: input, shape index: {}]
  %s1 = inlined_call_operand.vmem [shape: f32[2,3,8], index: 1, kind: input, shape index: {}]
  %s2 = inlined_call_operand.vmem [shape: bf16[2,8,128], index: 2, kind: input, shape index: {}]
  %s3 = inlined_call_operand.hbm [shape: bf16[2,16,128], index: 3, kind: output, shape index: {}]
  %s4 = sld [smem:[#allocation0]]
  $region45: #{tpu_custom_call.1} parent=0
    _
  %s6 = ssub.s32 1, %s4
  %s7 = scalar_select 0, %s6, %s4
  $region1: #{tpu_custom_call.1} parent=0
    #allocation2 [shape = 'u8[8192]{0}', space=vmem, size = 0x2000, scoped, tag = 'output window, operand 0']
    #allocation3 [shape = 's32[2]{0}', space=sflag, size = 0x8, scoped, tag = 'scoped memory for tpu_custom_call.1']
    %8 = vsyncpa [#allocation3], 0
    %s9 = scalar_lea.sflag [#allocation3], 1
    %10 = vsyncpa %s9, 0
    loop: start=0, step=1, limit=4
    $region2: #{tpu_custom_call.1} parent=1 // loop_pre_header
      _
    $region3: #{tpu_custom_call.1} parent=1 // loop_header
      %s12 = sphi 0, %s16
      %p13 = scmp.ge.s32.totalorder %s12, 4
      %s19 = sphi 0, %s31
      %s20 = sphi 0, %s27
      %s21 = sphi 0, %s19
      %s22 = sphi 0, %s20
      %s23 = sphi 0, %s21
      %s24 = sphi 0, %s22
      %s36 = sphi 0, %s38
      %s39 = sphi 0, %s36
      %s40 = sphi 0, %s39
      %s56 = sphi 0, %s40
      %s62 = sphi 0, %s64
      %s65 = sphi 0, %s62
      %s66 = sphi 0, %s65
      %s82 = sphi 0, %s66
      %s88 = sphi 0, %s90
      %s91 = sphi 0, %s88
      %s92 = sphi 0, %s91
      %s108 = sphi 0, %s92
      %s116 = sphi 0, %s118
      %s119 = sphi 0, %s116
      %s120 = sphi 0, %s119
      %s136 = sphi 0, %s120
    $region4: #{tpu_custom_call.1} parent=1 // loop_header_branch
      %15 = sbr.rel (%p13) target = $region8
    $region5: #{tpu_custom_call.1} parent=1 // loop_body
      %s17 = ssub.s32 %s12, 1
      %s18 = ssub.s32 %s12, 2
      %s25 = sadd.s32 1, %s20
      %p26 = scmp.ge.s32.totalorder %s25, 1
      %s27 = scalar_select %p26, 0, %s25
      %s28 = sadd.s32 1, %s19
      %s29 = scalar_select %p26, %s28, %s19
      %p30 = scmp.ge.s32.totalorder %s29, 2
      %s31 = scalar_select %p30, 0, %s29
      %s32 = ssub.s32 %s19, %s31
      %s33 = ssub.s32 %s20, %s27
      %s34 = sor.u32 %s32, %s33
      %p35 = scmp.eq.s32.totalorder %s34, 0
      %s37 = sadd.s32 %s36, 1
      %s38 = scalar_select %p35, %s36, %s37
      %p41 = pneg %p35
      %p42 = scmp.eq.s32.totalorder %s12, 1
      %p43 = por %p41, %p42
      %p44 = scmp.ne.s32.totalorder %s36, %s39
      %p45 = scmp.eq.s32.totalorder %s12, 0
      %p46 = por %p44, %p45
      %p47 = scmp.ne.s32.totalorder %s36, %s39
      %p48 = scmp.eq.s32.totalorder %s17, 1
      %p49 = por %p47, %p48
      %p50 = scmp.ne.s32.totalorder %s39, %s40
      %p51 = scmp.eq.s32.totalorder %s17, 0
      %p52 = por %p50, %p51
      %p53 = scmp.ne.s32.totalorder %s39, %s40
      %p54 = scmp.eq.s32.totalorder %s18, 1
      %p55 = por %p53, %p54
      %p57 = scmp.ne.s32.totalorder %s40, %s56
      %p58 = scmp.eq.s32.totalorder %s18, 0
      %p59 = por %p57, %p58
      %s60 = ssub.s32 %s19, %s31
      %p61 = scmp.eq.s32.totalorder %s60, 0
      %s63 = sadd.s32 %s62, 1
      %s64 = scalar_select %p61, %s62, %s63
      %p67 = pneg %p61
      %p68 = scmp.eq.s32.totalorder %s12, 1
      %p69 = por %p67, %p68
      %p70 = scmp.ne.s32.totalorder %s62, %s65
      %p71 = scmp.eq.s32.totalorder %s12, 0
      %p72 = por %p70, %p71
      %p73 = scmp.ne.s32.totalorder %s62, %s65
      %p74 = scmp.eq.s32.totalorder %s17, 1
      %p75 = por %p73, %p74
      %p76 = scmp.ne.s32.totalorder %s65, %s66
      %p77 = scmp.eq.s32.totalorder %s17, 0
      %p78 = por %p76, %p77
      %p79 = scmp.ne.s32.totalorder %s65, %s66
      %p80 = scmp.eq.s32.totalorder %s18, 1
      %p81 = por %p79, %p80
      %p83 = scmp.ne.s32.totalorder %s66, %s82
      %p84 = scmp.eq.s32.totalorder %s18, 0
      %p85 = por %p83, %p84
      %s86 = ssub.s32 %s19, %s31
      %p87 = scmp.eq.s32.totalorder %s86, 0
      %s89 = sadd.s32 %s88, 1
      %s90 = scalar_select %p87, %s88, %s89
      %p93 = pneg %p87
      %p94 = scmp.eq.s32.totalorder %s12, 1
      %p95 = por %p93, %p94
      %p96 = scmp.ne.s32.totalorder %s88, %s91
      %p97 = scmp.eq.s32.totalorder %s12, 0
      %p98 = por %p96, %p97
      %p99 = scmp.ne.s32.totalorder %s88, %s91
      %p100 = scmp.eq.s32.totalorder %s17, 1
      %p101 = por %p99, %p100
      %p102 = scmp.ne.s32.totalorder %s91, %s92
      %p103 = scmp.eq.s32.totalorder %s17, 0
      %p104 = por %p102, %p103
      %p105 = scmp.ne.s32.totalorder %s91, %s92
      %p106 = scmp.eq.s32.totalorder %s18, 1
      %p107 = por %p105, %p106
      %p109 = scmp.ne.s32.totalorder %s92, %s108
      %p110 = scmp.eq.s32.totalorder %s18, 0
      %p111 = por %p109, %p110
      %s112 = ssub.s32 %s19, %s31
      %s113 = ssub.s32 %s20, %s27
      %s114 = sor.u32 %s112, %s113
      %p115 = scmp.eq.s32.totalorder %s114, 0
      %s117 = sadd.s32 %s116, 1
      %s118 = scalar_select %p115, %s116, %s117
      %p121 = pneg %p115
      %p122 = scmp.eq.s32.totalorder %s12, 1
      %p123 = por %p121, %p122
      %p124 = scmp.ne.s32.totalorder %s116, %s119
      %p125 = scmp.eq.s32.totalorder %s12, 0
      %p126 = por %p124, %p125
      %p127 = scmp.ne.s32.totalorder %s116, %s119
      %p128 = scmp.eq.s32.totalorder %s17, 1
      %p129 = por %p127, %p128
      %p130 = scmp.ne.s32.totalorder %s119, %s120
      %p131 = scmp.eq.s32.totalorder %s17, 0
      %p132 = por %p130, %p131
      %p133 = scmp.ne.s32.totalorder %s119, %s120
      %p134 = scmp.eq.s32.totalorder %s18, 1
      %p135 = por %p133, %p134
      %p137 = scmp.ne.s32.totalorder %s120, %s136
      %p138 = scmp.eq.s32.totalorder %s18, 0
      %p139 = por %p137, %p138
      %p140 = scmp.le.s32.totalorder 1, %s12
      %p141 = scmp.lt.s32.totalorder %s12, 3
      %p142 = pnand %p140, %p141
      %p143 = pneg %p142
      // Predicated region
      $region9: #{tpu_custom_call.1} parent=5 // pred_check
        _
      $region10: #{tpu_custom_call.1} parent=5 // pred_check_branch
        %145 = sbr.rel (%p142) target = $region12
      $region11: #{tpu_custom_call.1} parent=5 // pred_region
        %s146 = ssub.s32 %s12, 1
      $region12: #{tpu_custom_call.1} parent=5 // pred_fallthru
        _
      %p147 = scmp.lt.s32.totalorder %s12, 2
      // Predicated region
      $region13: #{tpu_custom_call.1} parent=5 // pred_check
        %p148 = pneg %p147
      $region14: #{tpu_custom_call.1} parent=5 // pred_check_branch
        %150 = sbr.rel (%p148) target = $region16
      $region15: #{tpu_custom_call.1} parent=5 // pred_region
        // Predicated region
        $region17: #{tpu_custom_call.1} parent=15 // pred_check
          %p151 = pneg %p46
        $region18: #{tpu_custom_call.1} parent=15 // pred_check_branch
          %153 = sbr.rel (%p151) target = $region20
        $region19: #{tpu_custom_call.1} parent=15 // pred_region
          %s154 = smul.u32 2, %s20
          %p155 = scmp.lt.s32.totalorder %s19, 1
          %s156 = scalar_select %p155, %s19, 1
          %p157 = scmp.lt.s32.totalorder %s154, 1
          %s158 = scalar_select %p157, %s154, 1
          %s159 = smul.addr %s156, 2
          %s160 = sadd.s32 %s158, %s159
          %s161 = smul.addr %s160, 8
          %s162 = scalar_lea.vmem %s0, %s161
          %s163 = smul.u32 2, %s20
        $region20: #{tpu_custom_call.1} parent=15 // pred_fallthru
          _
        // Predicated region
        $region21: #{tpu_custom_call.1} parent=15 // pred_check
          %p164 = pneg %p72
        $region22: #{tpu_custom_call.1} parent=15 // pred_check_branch
          %166 = sbr.rel (%p164) target = $region24
        $region23: #{tpu_custom_call.1} parent=15 // pred_region
          %p167 = scmp.lt.s32.totalorder %s19, 1
          %s168 = scalar_select %p167, %s19, 1
          %s169 = smul.addr %s168, 4
          %s170 = scalar_lea.vmem %s1, %s169
        $region24: #{tpu_custom_call.1} parent=15 // pred_fallthru
          _
        // Predicated region
        $region25: #{tpu_custom_call.1} parent=15 // pred_check
          %p171 = pneg %p98
        $region26: #{tpu_custom_call.1} parent=15 // pred_check_branch
          %173 = sbr.rel (%p171) target = $region28
        $region27: #{tpu_custom_call.1} parent=15 // pred_region
          %p174 = scmp.lt.s32.totalorder %s19, 1
          %s175 = scalar_select %p174, %s19, 1
          %s176 = smul.addr %s175, 4
          %s177 = scalar_lea.vmem %s2, %s176
        $region28: #{tpu_custom_call.1} parent=15 // pred_fallthru
          _
      $region16: #{tpu_custom_call.1} parent=5 // pred_fallthru
        _
      %p178 = scmp.le.s32.totalorder 1, %s12
      %p179 = scmp.lt.s32.totalorder %s12, 3
      %p180 = pnand %p178, %p179
      %p181 = pneg %p180
      // Predicated region
      $region29: #{tpu_custom_call.1} parent=5 // pred_check
        _
      $region30: #{tpu_custom_call.1} parent=5 // pred_check_branch
        %183 = sbr.rel (%p180) target = $region32
      $region31: #{tpu_custom_call.1} parent=5 // pred_region
        %s184 = ssub.s32 %s12, 1
        %s185 = smul.u32 2, %s22
        %p186 = scmp.lt.s32.totalorder %s21, 1
        %s187 = scalar_select %p186, %s21, 1
        %p188 = scmp.lt.s32.totalorder %s185, 1
        %s189 = scalar_select %p188, %s185, 1
        %s190 = smul.addr %s187, 2
        %s191 = sadd.s32 %s189, %s190
        %s192 = smul.addr %s191, 8
        %s193 = scalar_lea.vmem %s0, %s192
        %p194 = pneg %p52
        %p195 = pneg %p49
        %p196 = scmp.lt.s32.totalorder %s21, 1
        %s197 = scalar_select %p196, %s21, 1
        %s198 = smul.addr %s197, 4
        %s199 = scalar_lea.vmem %s1, %s198
        %p200 = pneg %p78
        %p201 = pneg %p75
        %p202 = scmp.lt.s32.totalorder %s21, 1
        %s203 = scalar_select %p202, %s21, 1
        %s204 = smul.addr %s203, 4
        %s205 = scalar_lea.vmem %s2, %s204
        %p206 = pneg %p104
        %p207 = pneg %p101
        %p208 = pneg %p132
        %p209 = pneg %p129
        %s210 = sand.u32 %s119, 1
        %s211 = scalar_lea.sflag [#allocation3], %s210
        %s212 = sand.u32 %s119, 1
        %s213 = smul.addr %s212, 8
        %s214 = scalar_lea.vmem [#allocation2], %s213
        %s215 = smul.u32 2, %s22
        %p216 = scmp.lt.s32.totalorder %s21, 1
        %s217 = scalar_select %p216, %s21, 1
        %p218 = scmp.lt.s32.totalorder %s215, 1
        %s219 = scalar_select %p218, %s215, 1
        %s220 = smul.addr %s217, 2
        %s221 = sadd.s32 %s219, %s220
        %s222 = smul.addr %s221, 8
        %s223 = scalar_lea.vmem %s0, %s222
        %s224 = smul.u32 2, %s22
        %p225 = scmp.lt.s32.totalorder %s21, 1
        %s226 = scalar_select %p225, %s21, 1
        %s227 = smul.addr %s226, 4
        %s228 = scalar_lea.vmem %s1, %s227
        %p229 = scmp.lt.s32.totalorder %s21, 1
        %s230 = scalar_select %p229, %s21, 1
        %s231 = smul.addr %s230, 4
        %s232 = scalar_lea.vmem %s2, %s231
        %s233 = smul.u32 2, %s22
        %v235 = vld [vmem:[%s223] sm:$0xff]
        %v236 = vld [vmem:[%s223 + $0x8] sm:$0xff]
        %v237 = vld [vmem:[%s228] sm:$0x7]
        %239 = vset.pattern.permute.xlu0 0
        %240 = vperm.xlu0 %239, %v235
        %v241 = vpop.permute.xlu0 %240
        %244 = vset.pattern.permute.xlu0 0
        %245 = vperm.xlu0 %244, %v236
        %v246 = vpop.permute.xlu0 %245
        %v248 = vlaneseq
        %v249 = vshrl.u32 %v248, 7
        %v250 = vsub.s32 0, %v249
        %v251 = vrot.slane %v237, %v250
        %v252 = vsub.f32 %v241, %v251
        %v253 = vsub.f32 %v246, %v251
        %v254 = vmul.f32 %v252, %v252
        %v255 = vmul.f32 %v253, %v253
        %v256 = vadd.f32 %v254, 0.0
        %v257 = vadd.f32 %v255, 0.0
        %258 = vset.pattern.permute.xlu0 1
        %259 = vperm.xlu0 %258, %v235
        %v260 = vpop.permute.xlu0 %259
        %262 = vset.pattern.permute.xlu0 1
        %263 = vperm.xlu0 %262, %v236
        %v264 = vpop.permute.xlu0 %263
        %v266 = vlaneseq
        %v267 = vshrl.u32 %v266, 7
        %v268 = vsub.s32 1, %v267
        %v269 = vrot.slane %v237, %v268
        %v270 = vsub.f32 %v260, %v269
        %v271 = vsub.f32 %v264, %v269
        %v272 = vmul.f32 %v270, %v270
        %v273 = vmul.f32 %v271, %v271
        %v274 = vadd.f32 %v256, %v272
        %v275 = vadd.f32 %v257, %v273
        %276 = vset.pattern.permute.xlu0 2
        %277 = vperm.xlu0 %276, %v235
        %v278 = vpop.permute.xlu0 %277
        %280 = vset.pattern.permute.xlu0 2
        %281 = vperm.xlu0 %280, %v236
        %v282 = vpop.permute.xlu0 %281
        %v284 = vlaneseq
        %v285 = vshrl.u32 %v284, 7
        %v286 = vsub.s32 2, %v285
        %v287 = vrot.slane %v237, %v286
        %v288 = vsub.f32 %v278, %v287
        %v289 = vsub.f32 %v282, %v287
        %v290 = vmul.f32 %v288, %v288
        %v291 = vmul.f32 %v289, %v289
        %v292 = vadd.f32 %v274, %v290
        %v293 = vadd.f32 %v275, %v291
        %v294 = vlaneseq
        %v295 = vand.u32 %v294, 127
        %v298 = vand.u32 %v292, 4294967288
        %v299 = vand.u32 %v293, 4294967288
        %v300 = vor.u32 %v298, %v295
        %v301 = vor.u32 %v299, %v295
        %vm302 = vcmask 64512
        %v303 = vsel %vm302, %v300, 2147483647
        %v304 = vand.u32 %v303, 65535
        %v305 = vshra.s32 %v303, 16
        %v306 = vcvt.s32.f32 %v304
        %v307 = vcvt.s32.f32 %v305
        %308 = vmin.xlane.f32.xlu0 %v307
        %v309 = vpop.xlane.xlu0 %308
        %vm310 = vcmp.eq.f32.partialorder %v307, %v309
        %v311 = vsel %vm310, %v306, inf
        %312 = vmin.xlane.f32.xlu0 %v311
        %v313 = vpop.xlane.xlu0 %312
        %v314 = vcvt.f32.s32 %v313
        %v315 = vcvt.f32.s32 %v309
        %v316 = vshll.u32 %v315, 16
        %v317 = vadd.s32 %v316, %v314
        %v318 = vsel %vm302, %v301, 2147483647
        %v319 = vand.u32 %v318, 65535
        %v320 = vshra.s32 %v318, 16
        %v321 = vcvt.s32.f32 %v319
        %v322 = vcvt.s32.f32 %v320
        %323 = vmin.xlane.f32.xlu0 %v322
        %v324 = vpop.xlane.xlu0 %323
        %vm325 = vcmp.eq.f32.partialorder %v322, %v324
        %v326 = vsel %vm325, %v321, inf
        %327 = vmin.xlane.f32.xlu0 %v326
        %v328 = vpop.xlane.xlu0 %327
        %v329 = vcvt.f32.s32 %v328
        %v330 = vcvt.f32.s32 %v324
        %v331 = vshll.u32 %v330, 16
        %v332 = vadd.s32 %v331, %v329
        %v333 = vand.u32 %v317, 7
        %v334 = vand.u32 %v332, 7
        %v335 = vsub.s32 %v317, %v333
        %v336 = vsub.s32 %v332, %v334
        %v339 = vadd.f32 %v335, 1e-08
        %v340 = vadd.f32 %v336, 1e-08
        %v341 = vrcp.pop %v339
        %v342 = vrcp.pop %v340
        %vm343 = vcmp.eq.s32.totalorder %v295, %v333
        %vm344 = vcmp.eq.s32.totalorder %v295, %v334
        %v345 = vsel %vm343, 1, 0
        %v346 = vsel %vm344, 1, 0
        %v347 = vcvt.s32.f32 %v345
        %v348 = vcvt.s32.f32 %v346
        %v349 = vmul.f32 %v341, %v347
        %v350 = vmul.f32 %v342, %v348
        %v351 = vadd.f32 %v349, 0.0
        %v352 = vadd.f32 %v350, 0.0
        %v353 = vadd.f32 %v341, 0.0
        %v354 = vadd.f32 %v342, 0.0
        %v355 = vsel %vm343, 2147483647, %v300
        %v356 = vsel %vm344, 2147483647, %v301
        %v357 = vsel %vm302, %v355, 2147483647
        %v358 = vand.u32 %v357, 65535
        %v359 = vshra.s32 %v357, 16
        %v360 = vcvt.s32.f32 %v358
        %v361 = vcvt.s32.f32 %v359
        %362 = vmin.xlane.f32.xlu0 %v361
        %v363 = vpop.xlane.xlu0 %362
        %vm364 = vcmp.eq.f32.partialorder %v361, %v363
        %v365 = vsel %vm364, %v360, inf
        %366 = vmin.xlane.f32.xlu0 %v365
        %v367 = vpop.xlane.xlu0 %366
        %v368 = vcvt.f32.s32 %v367
        %v369 = vcvt.f32.s32 %v363
        %v370 = vshll.u32 %v369, 16
        %v371 = vadd.s32 %v370, %v368
        %v372 = vsel %vm302, %v356, 2147483647
        %v373 = vand.u32 %v372, 65535
        %v374 = vshra.s32 %v372, 16
        %v375 = vcvt.s32.f32 %v373
        %v376 = vcvt.s32.f32 %v374
        %377 = vmin.xlane.f32.xlu0 %v376
        %v378 = vpop.xlane.xlu0 %377
        %vm379 = vcmp.eq.f32.partialorder %v376, %v378
        %v380 = vsel %vm379, %v375, inf
        %381 = vmin.xlane.f32.xlu0 %v380
        %v382 = vpop.xlane.xlu0 %381
        %v383 = vcvt.f32.s32 %v382
        %v384 = vcvt.f32.s32 %v378
        %v385 = vshll.u32 %v384, 16
        %v386 = vadd.s32 %v385, %v383
        %v387 = vand.u32 %v371, 7
        %v388 = vand.u32 %v386, 7
        %v389 = vsub.s32 %v371, %v387
        %v390 = vsub.s32 %v386, %v388
        %v393 = vadd.f32 %v389, 1e-08
        %v394 = vadd.f32 %v390, 1e-08
        %v395 = vrcp.pop %v393
        %v396 = vrcp.pop %v394
        %vm397 = vcmp.eq.s32.totalorder %v295, %v387
        %vm398 = vcmp.eq.s32.totalorder %v295, %v388
        %v399 = vsel %vm397, 1, 0
        %v400 = vsel %vm398, 1, 0
        %v401 = vcvt.s32.f32 %v399
        %v402 = vcvt.s32.f32 %v400
        %v403 = vmul.f32 %v395, %v401
        %v404 = vmul.f32 %v396, %v402
        %v405 = vadd.f32 %v351, %v403
        %v406 = vadd.f32 %v352, %v404
        %v407 = vadd.f32 %v353, %v395
        %v408 = vadd.f32 %v354, %v396
        %v409 = vsel %vm397, 2147483647, %v355
        %v410 = vsel %vm398, 2147483647, %v356
        %v411 = vsel %vm302, %v409, 2147483647
        %v412 = vand.u32 %v411, 65535
        %v413 = vshra.s32 %v411, 16
        %v414 = vcvt.s32.f32 %v412
        %v415 = vcvt.s32.f32 %v413
        %416 = vmin.xlane.f32.xlu0 %v415
        %v417 = vpop.xlane.xlu0 %416
        %vm418 = vcmp.eq.f32.partialorder %v415, %v417
        %v419 = vsel %vm418, %v414, inf
        %420 = vmin.xlane.f32.xlu0 %v419
        %v421 = vpop.xlane.xlu0 %420
        %v422 = vcvt.f32.s32 %v421
        %v423 = vcvt.f32.s32 %v417
        %v424 = vshll.u32 %v423, 16
        %v425 = vadd.s32 %v424, %v422
        %v426 = vsel %vm302, %v410, 2147483647
        %v427 = vand.u32 %v426, 65535
        %v428 = vshra.s32 %v426, 16
        %v429 = vcvt.s32.f32 %v427
        %v430 = vcvt.s32.f32 %v428
        %431 = vmin.xlane.f32.xlu0 %v430
        %v432 = vpop.xlane.xlu0 %431
        %vm433 = vcmp.eq.f32.partialorder %v430, %v432
        %v434 = vsel %vm433, %v429, inf
        %435 = vmin.xlane.f32.xlu0 %v434
        %v436 = vpop.xlane.xlu0 %435
        %v437 = vcvt.f32.s32 %v436
        %v438 = vcvt.f32.s32 %v432
        %v439 = vshll.u32 %v438, 16
        %v440 = vadd.s32 %v439, %v437
        %v441 = vand.u32 %v425, 7
        %v442 = vand.u32 %v440, 7
        %v443 = vsub.s32 %v425, %v441
        %v444 = vsub.s32 %v440, %v442
        %v447 = vadd.f32 %v443, 1e-08
        %v448 = vadd.f32 %v444, 1e-08
        %v449 = vrcp.pop %v447
        %v450 = vrcp.pop %v448
        %vm451 = vcmp.eq.s32.totalorder %v295, %v441
        %vm452 = vcmp.eq.s32.totalorder %v295, %v442
        %v453 = vsel %vm451, 1, 0
        %v454 = vsel %vm452, 1, 0
        %v455 = vcvt.s32.f32 %v453
        %v456 = vcvt.s32.f32 %v454
        %v457 = vmul.f32 %v449, %v455
        %v458 = vmul.f32 %v450, %v456
        %v459 = vadd.f32 %v405, %v457
        %v460 = vadd.f32 %v406, %v458
        %v461 = vadd.f32 %v407, %v449
        %v462 = vadd.f32 %v408, %v450
        %v463 = vpack.c.bf16 %v460, %v459
        %v464 = vld [vmem:[%s232] sm:$0xf]
        %v466 = vsel %vm302, %v463, 0
        %vm468 = vcmask 1043456
        %v470 = vsel %vm468, %v464, 0
        %472 = vmatprep.subr.bf16.mxu0 0
        %473 = vmatpush1.bf16.msra.mxu0 %v470
        %474 = vmatprep.subr.bf16.mxu0 0
        %475 = vmatpush1.bf16.msra.mxu0 0
        %476 = vmatprep.subr.bf16.mxu0 0
        %477 = vmatpush1.bf16.msra.mxu0 0
        %478 = vmatprep.subr.bf16.mxu0 0
        %479 = vmatpush1.bf16.msra.mxu0 0
        %480 = vmatprep.subr.bf16.mxu0 0
        %481 = vmatpush1.bf16.msra.mxu0 0
        %482 = vmatprep.subr.bf16.mxu0 0
        %483 = vmatpush1.bf16.msra.mxu0 0
        %484 = vmatprep.subr.bf16.mxu0 0
        %485 = vmatpush1.bf16.msra.mxu0 0
        %486 = vmatprep.subr.bf16.mxu0 0
        %487 = vmatpush1.bf16.msra.mxu0 0
        %488 = vmatprep.subr.bf16.mxu0 0
        %489 = vmatpush1.bf16.msra.mxu0 0
        %490 = vmatprep.subr.bf16.mxu0 0
        %491 = vmatpush1.bf16.msra.mxu0 0
        %492 = vmatprep.subr.bf16.mxu0 0
        %493 = vmatpush1.bf16.msra.mxu0 0
        %494 = vmatprep.subr.bf16.mxu0 0
        %495 = vmatpush1.bf16.msra.mxu0 0
        %496 = vmatprep.subr.bf16.mxu0 0
        %497 = vmatpush1.bf16.msra.mxu0 0
        %498 = vmatprep.subr.bf16.mxu0 0
        %499 = vmatpush1.bf16.msra.mxu0 0
        %500 = vmatprep.subr.bf16.mxu0 0
        %501 = vmatpush1.bf16.msra.mxu0 0
        %502 = vmatprep.subr.bf16.mxu0 0
        %503 = vmatpush1.bf16.msra.mxu0 0
        %504 = vmatprep.mubr.bf16.mxu0 0
        %505 = vmatmul.mubr.bf16.gmra.mrb[0].mxu0 %v466
        %v506 = vpop.f32.mrb[0].mxu0
        %v507 = vadd.f32 0.0, %v506
        %v508 = vpop.f32.mrb[0].mxu0
        %v509 = vpop.f32.mrb[0].mxu0
        %v510 = vadd.f32 0.0, %v509
        %v511 = vpop.f32.mrb[0].mxu0
        %512 = vdwg.mxu0
        %v513 = vrcp.pop %v461
        %v514 = vrcp.pop %v462
        %v515 = vmul.f32 %v507, %v513
        %v516 = vmul.f32 %v510, %v514
        %v517 = vpack.c.bf16 %v516, %v515
        %v519 = vunpack.c.l.b16 %v517
        %v520 = vunpack.c.h.b16 %v517
        %v521 = vpack.c.b16 %v519, %v519
        %v522 = vpack.c.b16 %v520, %v520
        %525 = vst [vmem:[%s214] sm:$0xf] %v521
        %526 = vst [vmem:[%s214 + $0x4] sm:$0xf] %v522
        %s527 = sand.u32 %s119, 1
        %s528 = scalar_lea.sflag [#allocation3], %s527
        %s529 = sand.u32 %s119, 1
        %s530 = smul.addr %s529, 8
        %s531 = scalar_lea.vmem [#allocation2], %s530
        // Predicated region
        $region33: #{tpu_custom_call.1} parent=31 // pred_check
          %p532 = pneg %p129
        $region34: #{tpu_custom_call.1} parent=31 // pred_check_branch
          %534 = sbr.rel (%p532) target = $region36
        $region35: #{tpu_custom_call.1} parent=31 // pred_region
          %s535 = smul.u32 2, %s22
          %s537 = ssub.s32 128, 128
          %538 = vsyncadd %s528, %s537
          %s539 = smul.addr %s21, 2
          %s540 = sadd.s32 %s535, %s539
          %s541 = smul.addr %s540, 64
          %s542 = scalar_lea.hbm %s3, %s541
          %s543 = sshll.u32 %s531, 4
          %s544 = int_to_ptr.vmem [resolvable:$true] %s543
          %549 = dma.vmem_to_hbm [thread:$0]  %s544, 128, %s542, %s528, 64, 64, 4
        $region36: #{tpu_custom_call.1} parent=31 // pred_fallthru
          _
      $region32: #{tpu_custom_call.1} parent=5 // pred_fallthru
        _
      %p550 = scmp.le.s32.totalorder 2, %s12
      // Predicated region
      $region37: #{tpu_custom_call.1} parent=5 // pred_check
        %p551 = pneg %p550
      $region38: #{tpu_custom_call.1} parent=5 // pred_check_branch
        %553 = sbr.rel (%p551) target = $region40
      $region39: #{tpu_custom_call.1} parent=5 // pred_region
        %s554 = ssub.s32 %s12, 2
        // Predicated region
        $region41: #{tpu_custom_call.1} parent=39 // pred_check
          %p555 = pneg %p135
        $region42: #{tpu_custom_call.1} parent=39 // pred_check_branch
          %557 = sbr.rel (%p555) target = $region44
        $region43: #{tpu_custom_call.1} parent=39 // pred_region
          %s558 = sand.u32 %s120, 1
          %s559 = scalar_lea.sflag [#allocation3], %s558
          %s560 = sand.u32 %s120, 1
          %s561 = smul.addr %s560, 8
          %s562 = scalar_lea.vmem [#allocation2], %s561
          %563 = dma.done %s559, 128
        $region44: #{tpu_custom_call.1} parent=39 // pred_fallthru
          _
      $region40: #{tpu_custom_call.1} parent=5 // pred_fallthru
        _
    $region6: #{tpu_custom_call.1} parent=1 // loop_footer
      %s16 = sadd.s32 1, %s12
    $region7: #{tpu_custom_call.1} parent=1 // loop_footer_branch
      %11 = sbr.rel target = $region3
    $region8: #{tpu_custom_call.1} parent=1 // loop_exit
      _
    %564 = vsyncpa [#allocation3], 1
    %s565 = scalar_lea.sflag [#allocation3], 1
    %566 = vsyncpa %s565, 1

</llo_original>
